<compile_context>
chip_gen: v6e
topology: v6e:2x2x1
jax: 0.10.0
libtpu: 0.0.40
codegen_flags: <defaults>
</compile_context>

<pallas_src>
import jax
import jax.numpy as jnp
from jax.experimental import pallas as pl
from jax.experimental.pallas import tpu as pltpu


def _round_up(x, m):
    return (x + m - 1) // m * m


def _temporal_sum_kernel(seg_ref, src_ref, tgt_ref,
                         w1_ref, b1_ref, w2a_ref, w2b_ref, b2_ref,
                         out_ref, acc_ref):
    """Per (node-tile, edge-tile) block.

    seg_ref : [1, tileE]   int32  segment id (node_i) per edge, -1 for padding
    src_ref : [tileE, Qd]  f32    [node_feat_i ++ src_time_features]
    tgt_ref : [tileE, Kd]  f32    [node_feat_j ++ edge_feature ++ edge_time]
    w1_ref  : [Kd, Dp]     f32    merger1 weight (in x out, zero-padded cols)
    b1_ref  : [1, Dp]      f32
    w2a_ref : [Dp, Dp]     f32    merger2 rows acting on neighbors_sum
    w2b_ref : [Qd, Dp]     f32    merger2 rows acting on source_node_vec mean
    b2_ref  : [1, Dp]      f32
    out_ref : [tileN, Dp]  f32
    acc_ref : [tileN, 1+Qd+Dp] f32 scratch accumulator
    """
    e = pl.program_id(1)
    last_e = pl.num_programs(1) - 1
    tile_n, d_pad = out_ref.shape
    tile_e, q_dim = src_ref.shape

    @pl.when(e == 0)
    def _():
        acc_ref[...] = jnp.zeros_like(acc_ref)

    # One-hot scatter matrix for this (node tile, edge tile) block.
    node_base = pl.program_id(0) * tile_n
    row_ids = jax.lax.broadcasted_iota(jnp.int32, (tile_n, tile_e), 0) + node_base
    onehot = (row_ids == seg_ref[...]).astype(jnp.float32)            # [tileN, tileE]

    # merger1 (Linear) on every edge of the tile.
    neigh = jnp.dot(tgt_ref[...], w1_ref[...],
                    preferred_element_type=jnp.float32) + b1_ref[...]  # [tileE, Dp]

    # Fused scatter: counts + scatter_sum(src_vec) + scatter_sum(neigh)
    # with a single MXU contraction over the edge tile.
    rhs = jnp.concatenate(
        [jnp.ones((tile_e, 1), jnp.float32), src_ref[...], neigh], axis=1)
    acc_ref[...] += jnp.dot(onehot, rhs, preferred_element_type=jnp.float32)

    @pl.when(e == last_e)
    def _():
        acc = acc_ref[...]
        # Self-loops guarantee counts >= 1 for real nodes; clamp keeps padded
        # node rows finite (they are sliced off in the wrapper anyway).
        counts = jnp.maximum(acc[:, 0:1], 1.0)
        src_mean = acc[:, 1:1 + q_dim] * pl.reciprocal(counts, approx=False)
        neigh_sum = jnp.maximum(acc[:, 1 + q_dim:], 0.0)               # ReLU
        out_ref[...] = (
            jnp.dot(neigh_sum, w2a_ref[...], preferred_element_type=jnp.float32)
            + jnp.dot(src_mean, w2b_ref[...], preferred_element_type=jnp.float32)
            + b2_ref[...])


def temporal_sum_forward(node_feature, edge_index, edge_feature,
                         src_time_features, edge_time, params,
                         tile_n=None, tile_e=None):
    """Reproduces TemporalSumLayer.forward with mask=None, sample_ratio=None,
    reverse_flag=True, selfloop_flag=True."""
    n_nodes, n_node_feat = node_feature.shape
    w1, b1, w2, b2 = params              # w1:[Kd,D] b1:[D] w2:[D+Qd,D] b2:[D]
    out_dim = w1.shape[1]
    time_dim = src_time_features.shape[1]
    q_dim = n_node_feat + time_dim
    k_dim = n_node_feat + time_dim + edge_feature.shape[1]

    # --- reverse_edge ---
    rev = jnp.stack([edge_index[:, 1], edge_index[:, 0]], axis=1)
    ei = jnp.concatenate([edge_index, rev], axis=0)
    ef = jnp.tile(edge_feature, (2, 1))
    st = jnp.tile(src_time_features, (2, 1))
    et = jnp.tile(edge_time, (2, 1))

    # --- add_selfloop ---
    unit = src_time_features[0:1, :]
    nid = jnp.arange(n_nodes, dtype=edge_index.dtype)[:, None]
    ei = jnp.concatenate([ei, jnp.tile(nid, (1, 2))], axis=0)
    ef = jnp.concatenate(
        [ef, jnp.zeros((n_nodes, edge_feature.shape[1]), ef.dtype)], axis=0)
    st = jnp.concatenate([st, jnp.tile(unit, (n_nodes, 1))], axis=0)
    et = jnp.concatenate([et, jnp.tile(unit, (n_nodes, 1))], axis=0)

    node_i = ei[:, 0]
    node_j = ei[:, 1]
    src_vec = jnp.concatenate([node_feature[node_i, :], st], axis=1)        # [Ep, Qd]
    tgt_vec = jnp.concatenate([node_feature[node_j, :], ef, et], axis=1)    # [Ep, Kd]
    seg = node_i.astype(jnp.int32)
    n_edges_aug = seg.shape[0]

    # --- tiling / padding ---
    if tile_e is None:
        tile_e = min(512, _round_up(n_edges_aug, 128))
    if tile_n is None:
        tile_n = min(256, _round_up(n_nodes, 8))
    ep_pad = _round_up(n_edges_aug, tile_e)
    n_pad = _round_up(n_nodes, tile_n)
    d_pad = _round_up(max(out_dim, 128), 128)        # lane-dense output columns

    pad_e = ep_pad - n_edges_aug
    seg_p = jnp.pad(seg, (0, pad_e), constant_values=-1)[None, :]           # [1, Ep_pad]
    src_p = jnp.pad(src_vec, ((0, pad_e), (0, 0)))
    tgt_p = jnp.pad(tgt_vec, ((0, pad_e), (0, 0)))

    # --- zero-padded weights (padding is exact: pad cols of out stay 0) ---
    w1p = jnp.pad(w1, ((0, 0), (0, d_pad - out_dim)))
    b1p = jnp.pad(b1, (0, d_pad - out_dim))[None, :]
    w2a = w2[:out_dim, :]          # rows acting on neighbors_sum
    w2b = w2[out_dim:, :]          # rows acting on source_node_vec mean
    w2ap = jnp.pad(w2a, ((0, d_pad - out_dim), (0, d_pad - out_dim)))
    w2bp = jnp.pad(w2b, ((0, 0), (0, d_pad - out_dim)))
    b2p = jnp.pad(b2, (0, d_pad - out_dim))[None, :]

    grid = (n_pad // tile_n, ep_pad // tile_e)
    edge_only = lambda i, e: (e, 0)
    const_map = lambda i, e: (0, 0)

    out_p = pl.pallas_call(
        _temporal_sum_kernel,
        out_shape=jax.ShapeDtypeStruct((n_pad, d_pad), jnp.float32),
        grid_spec=pltpu.PrefetchScalarGridSpec(
            num_scalar_prefetch=0,
            grid=grid,
            in_specs=[
                pl.BlockSpec((1, tile_e), lambda i, e: (0, e)),      # seg
                pl.BlockSpec((tile_e, q_dim), edge_only),            # src_vec
                pl.BlockSpec((tile_e, k_dim), edge_only),            # tgt_vec
                pl.BlockSpec((k_dim, d_pad), const_map),             # w1
                pl.BlockSpec((1, d_pad), const_map),                 # b1
                pl.BlockSpec((d_pad, d_pad), const_map),             # w2a
                pl.BlockSpec((q_dim, d_pad), const_map),             # w2b
                pl.BlockSpec((1, d_pad), const_map),                 # b2
            ],
            out_specs=pl.BlockSpec((tile_n, d_pad), lambda i, e: (i, 0)),
            scratch_shapes=[pltpu.VMEM((tile_n, 1 + q_dim + d_pad), jnp.float32)],
        ),
        compiler_params=pltpu.CompilerParams(
            dimension_semantics=("parallel", "arbitrary"),
            vmem_limit_bytes=32 * 1024 * 1024),
    )(seg_p, src_p, tgt_p, w1p, b1p, w2ap, w2bp, b2p)

    return out_p[:n_nodes, :out_dim]


def _reference(node_feature, edge_index, edge_feature, src_time_features,
               edge_time, params):
    """Pure-JAX reference mirroring the PyTorch forward (for sanity check)."""
    n_nodes, _ = node_feature.shape
    w1, b1, w2, b2 = params
    rev = jnp.stack([edge_index[:, 1], edge_index[:, 0]], axis=1)
    ei = jnp.concatenate([edge_index, rev], axis=0)
    ef = jnp.tile(edge_feature, (2, 1))
    st = jnp.tile(src_time_features, (2, 1))
    et = jnp.tile(edge_time, (2, 1))
    unit = src_time_features[0:1, :]
    nid = jnp.arange(n_nodes, dtype=edge_index.dtype)[:, None]
    ei = jnp.concatenate([ei, jnp.tile(nid, (1, 2))], axis=0)
    ef = jnp.concatenate([ef, jnp.zeros((n_nodes, edge_feature.shape[1]))], axis=0)
    st = jnp.concatenate([st, jnp.tile(unit, (n_nodes, 1))], axis=0)
    et = jnp.concatenate([et, jnp.tile(unit, (n_nodes, 1))], axis=0)
    ni, njd = ei[:, 0], ei[:, 1]
    src_vec = jnp.concatenate([node_feature[ni], st], axis=1)
    tgt_vec = jnp.concatenate([node_feature[njd], ef, et], axis=1)
    counts = jax.ops.segment_sum(jnp.ones(ni.shape[0]), ni, num_segments=n_nodes)
    src_mean = jax.ops.segment_sum(src_vec, ni, num_segments=n_nodes) / counts[:, None]
    neigh = tgt_vec @ w1 + b1
    nsum = jnp.maximum(jax.ops.segment_sum(neigh, ni, num_segments=n_nodes), 0.0)
    return jnp.concatenate([nsum, src_mean], axis=1) @ w2 + b2


if __name__ == "__main__":
    # small shapes consistent with the module (E chosen so the augmented edge
    # count 2*E + N = 256 exercises two 128-wide edge tiles).
    N, E = 16, 120
    n_node_features, n_edge_features, time_dim, out_dim = 16, 8, 8, 32
    query_dim = n_node_features + time_dim
    key_dim = n_node_features + time_dim + n_edge_features

    key = jax.random.PRNGKey(0)
    ks = jax.random.split(key, 9)
    node_feature = jax.random.normal(ks[0], (N, n_node_features), jnp.float32)
    edge_index = jax.random.randint(ks[1], (E, 2), 0, N, jnp.int32)
    edge_feature = jax.random.normal(ks[2], (E, n_edge_features), jnp.float32)
    src_time_features = jax.random.normal(ks[3], (E, time_dim), jnp.float32)
    edge_time = jax.random.normal(ks[4], (E, time_dim), jnp.float32)

    # deterministic parameters (merger1: key_dim->out, merger2: out+query->out)
    w1 = jax.random.normal(ks[5], (key_dim, out_dim), jnp.float32) * 0.1
    b1 = jax.random.normal(ks[6], (out_dim,), jnp.float32) * 0.1
    w2 = jax.random.normal(ks[7], (out_dim + query_dim, out_dim), jnp.float32) * 0.1
    b2 = jax.random.normal(ks[8], (out_dim,), jnp.float32) * 0.1
    params = (w1, b1, w2, b2)

    out = temporal_sum_forward(node_feature, edge_index, edge_feature,
                               src_time_features, edge_time, params,
                               tile_e=128)
    jax.block_until_ready(out)

    ref = _reference(node_feature, edge_index, edge_feature,
                     src_time_features, edge_time, params)
    assert out.shape == (N, out_dim)
    assert jnp.allclose(out, ref, atol=2e-4, rtol=2e-4), "mismatch vs reference"
    print("KERNEL_OK")
</pallas_src>

<mosaic_0001>
module attributes {stable_mosaic.version = 11 : i64} {
  func.func @_temporal_sum_kernel(%arg0: i32, %arg1: i32, %arg2: memref<1x128xi32, #tpu.memory_space<vmem>>, %arg3: memref<128x24xf32, #tpu.memory_space<vmem>>, %arg4: memref<128x32xf32, #tpu.memory_space<vmem>>, %arg5: memref<32x128xf32, #tpu.memory_space<vmem>>, %arg6: memref<1x128xf32, #tpu.memory_space<vmem>>, %arg7: memref<128x128xf32, #tpu.memory_space<vmem>>, %arg8: memref<24x128xf32, #tpu.memory_space<vmem>>, %arg9: memref<1x128xf32, #tpu.memory_space<vmem>>, %arg10: memref<16x128xf32, #tpu.memory_space<vmem>>, %arg11: memref<16x153xf32, #tpu.memory_space<vmem>>) attributes {dimension_semantics = [#tpu.dimension_semantics<parallel>, #tpu.dimension_semantics<arbitrary>], iteration_bounds = array<i64: 1, 2>, scalar_prefetch = 0 : i64, scratch_operands = 1 : i64, tpu.core_type = #tpu.core_type<tc>, window_params = [{transform_indices = @transform_0, window_bounds = array<i64: 1, 128>}, {transform_indices = @transform_1, window_bounds = array<i64: 128, 24>}, {transform_indices = @transform_2, window_bounds = array<i64: 128, 32>}, {pipeline_mode = #tpu.pipeline_mode<synchronous>, transform_indices = @transform_3, window_bounds = array<i64: 32, 128>}, {pipeline_mode = #tpu.pipeline_mode<synchronous>, transform_indices = @transform_4, window_bounds = array<i64: 1, 128>}, {pipeline_mode = #tpu.pipeline_mode<synchronous>, transform_indices = @transform_5, window_bounds = array<i64: 128, 128>}, {pipeline_mode = #tpu.pipeline_mode<synchronous>, transform_indices = @transform_6, window_bounds = array<i64: 24, 128>}, {pipeline_mode = #tpu.pipeline_mode<synchronous>, transform_indices = @transform_7, window_bounds = array<i64: 1, 128>}, {transform_indices = @transform_8, window_bounds = array<i64: 16, 128>}]} {
    %c0_i32 = arith.constant 0 : i32
    %0 = arith.cmpi eq, %arg1, %c0_i32 : i32
    %1 = arith.extui %0 : i1 to i32
    %c0_i32_0 = arith.constant 0 : i32
    %2 = arith.cmpi ne, %1, %c0_i32_0 : i32
    scf.if %2 {
      %cst_17 = arith.constant 0.000000e+00 : f32
      %28 = vector.broadcast %cst_17 : f32 to vector<16x153xf32>
      %c0_18 = arith.constant 0 : index
      %c0_19 = arith.constant 0 : index
      %29 = vector.load %arg11[%c0_18, %c0_19] : memref<16x153xf32, #tpu.memory_space<vmem>>, vector<16x153xf32>
      tpu.vector_store %arg11[%c0_18, %c0_19], %28 {strides = array<i32>} : memref<16x153xf32, #tpu.memory_space<vmem>>, vector<16x153xf32>,
    } else {
    }
    %c16_i32 = arith.constant 16 : i32
    %3 = arith.muli %arg0, %c16_i32 : i32
    %4 = tpu.iota {dimensions = array<i32: 0>} : vector<16x128xi32>
    %5 = vector.broadcast %3 : i32 to vector<16x128xi32>
    %6 = arith.addi %4, %5 : vector<16x128xi32>
    %c0 = arith.constant 0 : index
    %c0_1 = arith.constant 0 : index
    %7 = vector.load %arg2[%c0, %c0_1] : memref<1x128xi32, #tpu.memory_space<vmem>>, vector<1x128xi32>
    %8 = vector.broadcast %7 : vector<1x128xi32> to vector<16x128xi32>
    %9 = arith.cmpi eq, %6, %8 : vector<16x128xi32>
    %10 = arith.extui %9 : vector<16x128xi1> to vector<16x128xi32>
    %11 = arith.sitofp %10 : vector<16x128xi32> to vector<16x128xf32>
    %c0_2 = arith.constant 0 : index
    %c0_3 = arith.constant 0 : index
    %12 = vector.load %arg4[%c0_2, %c0_3] : memref<128x32xf32, #tpu.memory_space<vmem>>, vector<128x32xf32>
    %c0_4 = arith.constant 0 : index
    %c0_5 = arith.constant 0 : index
    %13 = vector.load %arg5[%c0_4, %c0_5] : memref<32x128xf32, #tpu.memory_space<vmem>>, vector<32x128xf32>
    %cst = arith.constant dense<0.000000e+00> : vector<128x128xf32>
    %14 = tpu.matmul %12, %13, %cst {dimension_numbers = #tpu.dot_dimension_numbers<[1], [0], [0], [1], [0, 0, 1, 1], [], []>} : vector<128x32xf32>, vector<32x128xf32>, vector<128x128xf32> -> vector<128x128xf32>
    %c0_6 = arith.constant 0 : index
    %c0_7 = arith.constant 0 : index
    %15 = vector.load %arg6[%c0_6, %c0_7] : memref<1x128xf32, #tpu.memory_space<vmem>>, vector<1x128xf32>
    %16 = vector.broadcast %15 : vector<1x128xf32> to vector<128x128xf32>
    %17 = arith.addf %14, %16 : vector<128x128xf32>
    %cst_8 = arith.constant 1.000000e+00 : f32
    %18 = vector.broadcast %cst_8 : f32 to vector<128x1xf32>
    %c0_9 = arith.constant 0 : index
    %c0_10 = arith.constant 0 : index
    %19 = vector.load %arg3[%c0_9, %c0_10] : memref<128x24xf32, #tpu.memory_space<vmem>>, vector<128x24xf32>
    %20 = tpu.concatenate %18, %19, %17 in 1 : vector<128x1xf32>, vector<128x24xf32>, vector<128x128xf32> -> vector<128x153xf32>
    %c0_11 = arith.constant 0 : index
    %c0_12 = arith.constant 0 : index
    %21 = vector.load %arg11[%c0_11, %c0_12] : memref<16x153xf32, #tpu.memory_space<vmem>>, vector<16x153xf32>
    %cst_13 = arith.constant dense<0.000000e+00> : vector<16x153xf32>
    %22 = tpu.matmul %11, %20, %cst_13 {dimension_numbers = #tpu.dot_dimension_numbers<[1], [0], [0], [1], [0, 0, 1, 1], [], []>} : vector<16x128xf32>, vector<128x153xf32>, vector<16x153xf32> -> vector<16x153xf32>
    %23 = arith.addf %21, %22 : vector<16x153xf32>
    %c0_14 = arith.constant 0 : index
    %c0_15 = arith.constant 0 : index
    %24 = vector.load %arg11[%c0_14, %c0_15] : memref<16x153xf32, #tpu.memory_space<vmem>>, vector<16x153xf32>
    tpu.vector_store %arg11[%c0_14, %c0_15], %23 {strides = array<i32>} : memref<16x153xf32, #tpu.memory_space<vmem>>, vector<16x153xf32>,
    %c1_i32 = arith.constant 1 : i32
    %25 = arith.cmpi eq, %arg1, %c1_i32 : i32
    %26 = arith.extui %25 : i1 to i32
    %c0_i32_16 = arith.constant 0 : i32
    %27 = arith.cmpi ne, %26, %c0_i32_16 : i32
    scf.if %27 {
      %c0_17 = arith.constant 0 : index
      %c0_18 = arith.constant 0 : index
      %28 = vector.load %arg11[%c0_17, %c0_18] : memref<16x153xf32, #tpu.memory_space<vmem>>, vector<16x153xf32>
      %29 = vector.extract_strided_slice %28 {offsets = [0, 0], sizes = [16, 1], strides = [1, 1]} : vector<16x153xf32> to vector<16x1xf32>
      %cst_19 = arith.constant 1.000000e+00 : f32
      %30 = vector.broadcast %cst_19 : f32 to vector<16x1xf32>
      %31 = arith.maximumf %29, %30 : vector<16x1xf32>
      %32 = vector.extract_strided_slice %28 {offsets = [0, 1], sizes = [16, 24], strides = [1, 1]} : vector<16x153xf32> to vector<16x24xf32>
      %33 = tpu.reciprocal %31 : vector<16x1xf32> -> vector<16x1xf32>
      %34 = vector.broadcast %33 : vector<16x1xf32> to vector<16x24xf32>
      %35 = arith.mulf %32, %34 : vector<16x24xf32>
      %36 = vector.extract_strided_slice %28 {offsets = [0, 25], sizes = [16, 128], strides = [1, 1]} : vector<16x153xf32> to vector<16x128xf32>
      %cst_20 = arith.constant 0.000000e+00 : f32
      %37 = vector.broadcast %cst_20 : f32 to vector<16x128xf32>
      %38 = arith.maximumf %36, %37 : vector<16x128xf32>
      %c0_21 = arith.constant 0 : index
      %c0_22 = arith.constant 0 : index
      %39 = vector.load %arg7[%c0_21, %c0_22] : memref<128x128xf32, #tpu.memory_space<vmem>>, vector<128x128xf32>
      %cst_23 = arith.constant dense<0.000000e+00> : vector<16x128xf32>
      %40 = tpu.matmul %38, %39, %cst_23 {dimension_numbers = #tpu.dot_dimension_numbers<[1], [0], [0], [1], [0, 0, 1, 1], [], []>} : vector<16x128xf32>, vector<128x128xf32>, vector<16x128xf32> -> vector<16x128xf32>
      %c0_24 = arith.constant 0 : index
      %c0_25 = arith.constant 0 : index
      %41 = vector.load %arg8[%c0_24, %c0_25] : memref<24x128xf32, #tpu.memory_space<vmem>>, vector<24x128xf32>
      %cst_26 = arith.constant dense<0.000000e+00> : vector<16x128xf32>
      %42 = tpu.matmul %35, %41, %cst_26 {dimension_numbers = #tpu.dot_dimension_numbers<[1], [0], [0], [1], [0, 0, 1, 1], [], []>} : vector<16x24xf32>, vector<24x128xf32>, vector<16x128xf32> -> vector<16x128xf32>
      %43 = arith.addf %40, %42 : vector<16x128xf32>
      %c0_27 = arith.constant 0 : index
      %c0_28 = arith.constant 0 : index
      %44 = vector.load %arg9[%c0_27, %c0_28] : memref<1x128xf32, #tpu.memory_space<vmem>>, vector<1x128xf32>
      %45 = vector.broadcast %44 : vector<1x128xf32> to vector<16x128xf32>
      %46 = arith.addf %43, %45 : vector<16x128xf32>
      %c0_29 = arith.constant 0 : index
      %c0_30 = arith.constant 0 : index
      %47 = vector.load %arg10[%c0_29, %c0_30] : memref<16x128xf32, #tpu.memory_space<vmem>>, vector<16x128xf32>
      tpu.vector_store %arg10[%c0_29, %c0_30], %46 {strides = array<i32>} : memref<16x128xf32, #tpu.memory_space<vmem>>, vector<16x128xf32>,
    } else {
    }
    return
  }
  func.func @transform_0(%arg0: i32, %arg1: i32) -> (i32, i32) {
    %c0_i32 = arith.constant 0 : i32
    %c0_i32_0 = arith.constant 0 : i32
    return %c0_i32, %arg1 : i32, i32
  }
  func.func @transform_1(%arg0: i32, %arg1: i32) -> (i32, i32) {
    %c0_i32 = arith.constant 0 : i32
    %c0_i32_0 = arith.constant 0 : i32
    return %arg1, %c0_i32 : i32, i32
  }
  func.func @transform_2(%arg0: i32, %arg1: i32) -> (i32, i32) {
    %c0_i32 = arith.constant 0 : i32
    %c0_i32_0 = arith.constant 0 : i32
    return %arg1, %c0_i32 : i32, i32
  }
  func.func @transform_3(%arg0: i32, %arg1: i32) -> (i32, i32) {
    %c0_i32 = arith.constant 0 : i32
    %c0_i32_0 = arith.constant 0 : i32
    %c0_i32_1 = arith.constant 0 : i32
    return %c0_i32, %c0_i32_0 : i32, i32
  }
  func.func @transform_4(%arg0: i32, %arg1: i32) -> (i32, i32) {
    %c0_i32 = arith.constant 0 : i32
    %c0_i32_0 = arith.constant 0 : i32
    %c0_i32_1 = arith.constant 0 : i32
    return %c0_i32, %c0_i32_0 : i32, i32
  }
  func.func @transform_5(%arg0: i32, %arg1: i32) -> (i32, i32) {
    %c0_i32 = arith.constant 0 : i32
    %c0_i32_0 = arith.constant 0 : i32
    %c0_i32_1 = arith.constant 0 : i32
    return %c0_i32, %c0_i32_0 : i32, i32
  }
  func.func @transform_6(%arg0: i32, %arg1: i32) -> (i32, i32) {
    %c0_i32 = arith.constant 0 : i32
    %c0_i32_0 = arith.constant 0 : i32
    %c0_i32_1 = arith.constant 0 : i32
    return %c0_i32, %c0_i32_0 : i32, i32
  }
  func.func @transform_7(%arg0: i32, %arg1: i32) -> (i32, i32) {
    %c0_i32 = arith.constant 0 : i32
    %c0_i32_0 = arith.constant 0 : i32
    %c0_i32_1 = arith.constant 0 : i32
    return %c0_i32, %c0_i32_0 : i32, i32
  }
  func.func @transform_8(%arg0: i32, %arg1: i32) -> (i32, i32) {
    %c0_i32 = arith.constant 0 : i32
    %c0_i32_0 = arith.constant 0 : i32
    return %arg0, %c0_i32 : i32, i32
  }
}

</mosaic_0001>

<llo_original>
// kernel: tpu_custom_call.1
$region0: #{tpu_custom_call.1}
  #allocation0 [shape = 'u32[]', space=smem, size = 0x4, offset = 0x4, fixed_abs, tag = 'smem constant byte address 0x4 - core index']
  #allocation1 [shape = 'u32[144,128]{1,0:T(1,128)}', space=vmem, size = 0x12000, scoped, tag = 'internal scratch']
  #allocation2 [shape = 'f32[16,153]{1,0:T(8,128)}', space=vmem, size = 0x4000, scoped, tag = 'scratch operand']
  %s0 = inlined_call_operand.vmem [shape: s32[1,256], index: 0, kind: input, shape index: {}]
  %s1 = inlined_call_operand.vmem [shape: f32[256,24], index: 1, kind: input, shape index: {}]
  %s2 = inlined_call_operand.vmem [shape: f32[256,32], index: 2, kind: input, shape index: {}]
  %s3 = inlined_call_operand.vmem [shape: f32[32,128], index: 3, kind: input, shape index: {}]
  %s4 = inlined_call_operand.vmem [shape: f32[1,128], index: 4, kind: input, shape index: {}]
  %s5 = inlined_call_operand.vmem [shape: f32[128,128], index: 5, kind: input, shape index: {}]
  %s6 = inlined_call_operand.vmem [shape: f32[24,128], index: 6, kind: input, shape index: {}]
  %s7 = inlined_call_operand.vmem [shape: f32[1,128], index: 7, kind: input, shape index: {}]
  %s8 = inlined_call_operand.hbm [shape: f32[16,128], index: 8, kind: output, shape index: {}]
  %s9 = sld [smem:[#allocation0]]
  $region73: #{tpu_custom_call.1} parent=0
    _
  %s11 = ssub.s32 1, %s9
  %s12 = scalar_select 0, %s11, %s9
  $region1: #{tpu_custom_call.1} parent=0
    #allocation3 [shape = 'u8[8192]{0}', space=vmem, size = 0x2000, scoped, tag = 'output window, operand 0, single buffered']
    #allocation4 [shape = 's32[2]{0}', space=sflag, size = 0x8, scoped, tag = 'scoped memory for tpu_custom_call.1']
    %13 = vsyncpa [#allocation4], 0
    loop: start=0, step=1, limit=4
    $region2: #{tpu_custom_call.1} parent=1 // loop_pre_header
      _
    $region3: #{tpu_custom_call.1} parent=1 // loop_header
      %s15 = sphi 0, %s19
      %p16 = scmp.ge.s32.totalorder %s15, 4
      %s22 = sphi 0, %s34
      %s23 = sphi 0, %s30
      %s24 = sphi 0, %s22
      %s25 = sphi 0, %s23
      %s26 = sphi 0, %s24
      %s27 = sphi 0, %s25
      %s37 = sphi 0, %s39
      %s40 = sphi 0, %s37
      %s41 = sphi 0, %s40
      %s57 = sphi 0, %s41
      %s63 = sphi 0, %s65
      %s66 = sphi 0, %s63
      %s67 = sphi 0, %s66
      %s83 = sphi 0, %s67
      %s89 = sphi 0, %s91
      %s92 = sphi 0, %s89
      %s93 = sphi 0, %s92
      %s109 = sphi 0, %s93
      %s113 = sphi 0, %s113
      %s115 = sphi 0, %s113
      %s116 = sphi 0, %s115
      %s130 = sphi 0, %s116
      %s134 = sphi 0, %s134
      %s136 = sphi 0, %s134
      %s137 = sphi 0, %s136
      %s151 = sphi 0, %s137
      %s155 = sphi 0, %s155
      %s157 = sphi 0, %s155
      %s158 = sphi 0, %s157
      %s172 = sphi 0, %s158
      %s176 = sphi 0, %s176
      %s178 = sphi 0, %s176
      %s179 = sphi 0, %s178
      %s193 = sphi 0, %s179
      %s197 = sphi 0, %s197
      %s199 = sphi 0, %s197
      %s200 = sphi 0, %s199
      %s214 = sphi 0, %s200
      %s220 = sphi 0, %s222
      %s223 = sphi 0, %s220
      %s224 = sphi 0, %s223
      %s240 = sphi 0, %s224
    $region4: #{tpu_custom_call.1} parent=1 // loop_header_branch
      %18 = sbr.rel (%p16) target = $region8
    $region5: #{tpu_custom_call.1} parent=1 // loop_body
      %s20 = ssub.s32 %s15, 1
      %s21 = ssub.s32 %s15, 2
      %s28 = sadd.s32 1, %s23
      %p29 = scmp.ge.s32.totalorder %s28, 2
      %s30 = scalar_select %p29, 0, %s28
      %s31 = sadd.s32 1, %s22
      %s32 = scalar_select %p29, %s31, %s22
      %p33 = scmp.ge.s32.totalorder %s32, 1
      %s34 = scalar_select %p33, 0, %s32
      %s35 = ssub.s32 %s23, %s30
      %p36 = scmp.eq.s32.totalorder %s35, 0
      %s38 = sadd.s32 %s37, 1
      %s39 = scalar_select %p36, %s37, %s38
      %p42 = pneg %p36
      %p43 = scmp.eq.s32.totalorder %s15, 1
      %p44 = por %p42, %p43
      %p45 = scmp.ne.s32.totalorder %s37, %s40
      %p46 = scmp.eq.s32.totalorder %s15, 0
      %p47 = por %p45, %p46
      %p48 = scmp.ne.s32.totalorder %s37, %s40
      %p49 = scmp.eq.s32.totalorder %s20, 1
      %p50 = por %p48, %p49
      %p51 = scmp.ne.s32.totalorder %s40, %s41
      %p52 = scmp.eq.s32.totalorder %s20, 0
      %p53 = por %p51, %p52
      %p54 = scmp.ne.s32.totalorder %s40, %s41
      %p55 = scmp.eq.s32.totalorder %s21, 1
      %p56 = por %p54, %p55
      %p58 = scmp.ne.s32.totalorder %s41, %s57
      %p59 = scmp.eq.s32.totalorder %s21, 0
      %p60 = por %p58, %p59
      %s61 = ssub.s32 %s23, %s30
      %p62 = scmp.eq.s32.totalorder %s61, 0
      %s64 = sadd.s32 %s63, 1
      %s65 = scalar_select %p62, %s63, %s64
      %p68 = pneg %p62
      %p69 = scmp.eq.s32.totalorder %s15, 1
      %p70 = por %p68, %p69
      %p71 = scmp.ne.s32.totalorder %s63, %s66
      %p72 = scmp.eq.s32.totalorder %s15, 0
      %p73 = por %p71, %p72
      %p74 = scmp.ne.s32.totalorder %s63, %s66
      %p75 = scmp.eq.s32.totalorder %s20, 1
      %p76 = por %p74, %p75
      %p77 = scmp.ne.s32.totalorder %s66, %s67
      %p78 = scmp.eq.s32.totalorder %s20, 0
      %p79 = por %p77, %p78
      %p80 = scmp.ne.s32.totalorder %s66, %s67
      %p81 = scmp.eq.s32.totalorder %s21, 1
      %p82 = por %p80, %p81
      %p84 = scmp.ne.s32.totalorder %s67, %s83
      %p85 = scmp.eq.s32.totalorder %s21, 0
      %p86 = por %p84, %p85
      %s87 = ssub.s32 %s23, %s30
      %p88 = scmp.eq.s32.totalorder %s87, 0
      %s90 = sadd.s32 %s89, 1
      %s91 = scalar_select %p88, %s89, %s90
      %p94 = pneg %p88
      %p95 = scmp.eq.s32.totalorder %s15, 1
      %p96 = por %p94, %p95
      %p97 = scmp.ne.s32.totalorder %s89, %s92
      %p98 = scmp.eq.s32.totalorder %s15, 0
      %p99 = por %p97, %p98
      %p100 = scmp.ne.s32.totalorder %s89, %s92
      %p101 = scmp.eq.s32.totalorder %s20, 1
      %p102 = por %p100, %p101
      %p103 = scmp.ne.s32.totalorder %s92, %s93
      %p104 = scmp.eq.s32.totalorder %s20, 0
      %p105 = por %p103, %p104
      %p106 = scmp.ne.s32.totalorder %s92, %s93
      %p107 = scmp.eq.s32.totalorder %s21, 1
      %p108 = por %p106, %p107
      %p110 = scmp.ne.s32.totalorder %s93, %s109
      %p111 = scmp.eq.s32.totalorder %s21, 0
      %p112 = por %p110, %p111
      %s114 = sadd.s32 %s113, 1
      %p117 = scmp.eq.s32.totalorder %s15, 1
      %p118 = scmp.ne.s32.totalorder %s113, %s115
      %p119 = scmp.eq.s32.totalorder %s15, 0
      %p120 = por %p118, %p119
      %p121 = scmp.ne.s32.totalorder %s113, %s115
      %p122 = scmp.eq.s32.totalorder %s20, 1
      %p123 = por %p121, %p122
      %p124 = scmp.ne.s32.totalorder %s115, %s116
      %p125 = scmp.eq.s32.totalorder %s20, 0
      %p126 = por %p124, %p125
      %p127 = scmp.ne.s32.totalorder %s115, %s116
      %p128 = scmp.eq.s32.totalorder %s21, 1
      %p129 = por %p127, %p128
      %p131 = scmp.ne.s32.totalorder %s116, %s130
      %p132 = scmp.eq.s32.totalorder %s21, 0
      %p133 = por %p131, %p132
      %s135 = sadd.s32 %s134, 1
      %p138 = scmp.eq.s32.totalorder %s15, 1
      %p139 = scmp.ne.s32.totalorder %s134, %s136
      %p140 = scmp.eq.s32.totalorder %s15, 0
      %p141 = por %p139, %p140
      %p142 = scmp.ne.s32.totalorder %s134, %s136
      %p143 = scmp.eq.s32.totalorder %s20, 1
      %p144 = por %p142, %p143
      %p145 = scmp.ne.s32.totalorder %s136, %s137
      %p146 = scmp.eq.s32.totalorder %s20, 0
      %p147 = por %p145, %p146
      %p148 = scmp.ne.s32.totalorder %s136, %s137
      %p149 = scmp.eq.s32.totalorder %s21, 1
      %p150 = por %p148, %p149
      %p152 = scmp.ne.s32.totalorder %s137, %s151
      %p153 = scmp.eq.s32.totalorder %s21, 0
      %p154 = por %p152, %p153
      %s156 = sadd.s32 %s155, 1
      %p159 = scmp.eq.s32.totalorder %s15, 1
      %p160 = scmp.ne.s32.totalorder %s155, %s157
      %p161 = scmp.eq.s32.totalorder %s15, 0
      %p162 = por %p160, %p161
      %p163 = scmp.ne.s32.totalorder %s155, %s157
      %p164 = scmp.eq.s32.totalorder %s20, 1
      %p165 = por %p163, %p164
      %p166 = scmp.ne.s32.totalorder %s157, %s158
      %p167 = scmp.eq.s32.totalorder %s20, 0
      %p168 = por %p166, %p167
      %p169 = scmp.ne.s32.totalorder %s157, %s158
      %p170 = scmp.eq.s32.totalorder %s21, 1
      %p171 = por %p169, %p170
      %p173 = scmp.ne.s32.totalorder %s158, %s172
      %p174 = scmp.eq.s32.totalorder %s21, 0
      %p175 = por %p173, %p174
      %s177 = sadd.s32 %s176, 1
      %p180 = scmp.eq.s32.totalorder %s15, 1
      %p181 = scmp.ne.s32.totalorder %s176, %s178
      %p182 = scmp.eq.s32.totalorder %s15, 0
      %p183 = por %p181, %p182
      %p184 = scmp.ne.s32.totalorder %s176, %s178
      %p185 = scmp.eq.s32.totalorder %s20, 1
      %p186 = por %p184, %p185
      %p187 = scmp.ne.s32.totalorder %s178, %s179
      %p188 = scmp.eq.s32.totalorder %s20, 0
      %p189 = por %p187, %p188
      %p190 = scmp.ne.s32.totalorder %s178, %s179
      %p191 = scmp.eq.s32.totalorder %s21, 1
      %p192 = por %p190, %p191
      %p194 = scmp.ne.s32.totalorder %s179, %s193
      %p195 = scmp.eq.s32.totalorder %s21, 0
      %p196 = por %p194, %p195
      %s198 = sadd.s32 %s197, 1
      %p201 = scmp.eq.s32.totalorder %s15, 1
      %p202 = scmp.ne.s32.totalorder %s197, %s199
      %p203 = scmp.eq.s32.totalorder %s15, 0
      %p204 = por %p202, %p203
      %p205 = scmp.ne.s32.totalorder %s197, %s199
      %p206 = scmp.eq.s32.totalorder %s20, 1
      %p207 = por %p205, %p206
      %p208 = scmp.ne.s32.totalorder %s199, %s200
      %p209 = scmp.eq.s32.totalorder %s20, 0
      %p210 = por %p208, %p209
      %p211 = scmp.ne.s32.totalorder %s199, %s200
      %p212 = scmp.eq.s32.totalorder %s21, 1
      %p213 = por %p211, %p212
      %p215 = scmp.ne.s32.totalorder %s200, %s214
      %p216 = scmp.eq.s32.totalorder %s21, 0
      %p217 = por %p215, %p216
      %s218 = ssub.s32 %s22, %s34
      %p219 = scmp.eq.s32.totalorder %s218, 0
      %s221 = sadd.s32 %s220, 1
      %s222 = scalar_select %p219, %s220, %s221
      %p225 = pneg %p219
      %p226 = scmp.eq.s32.totalorder %s15, 1
      %p227 = por %p225, %p226
      %p228 = scmp.ne.s32.totalorder %s220, %s223
      %p229 = scmp.eq.s32.totalorder %s15, 0
      %p230 = por %p228, %p229
      %p231 = scmp.ne.s32.totalorder %s220, %s223
      %p232 = scmp.eq.s32.totalorder %s20, 1
      %p233 = por %p231, %p232
      %p234 = scmp.ne.s32.totalorder %s223, %s224
      %p235 = scmp.eq.s32.totalorder %s20, 0
      %p236 = por %p234, %p235
      %p237 = scmp.ne.s32.totalorder %s223, %s224
      %p238 = scmp.eq.s32.totalorder %s21, 1
      %p239 = por %p237, %p238
      %p241 = scmp.ne.s32.totalorder %s224, %s240
      %p242 = scmp.eq.s32.totalorder %s21, 0
      %p243 = por %p241, %p242
      %p244 = scmp.le.s32.totalorder 1, %s15
      %p245 = scmp.lt.s32.totalorder %s15, 3
      %p246 = pnand %p244, %p245
      %p247 = pneg %p246
      // Predicated region
      $region9: #{tpu_custom_call.1} parent=5 // pred_check
        _
      $region10: #{tpu_custom_call.1} parent=5 // pred_check_branch
        %249 = sbr.rel (%p246) target = $region12
      $region11: #{tpu_custom_call.1} parent=5 // pred_region
        %s250 = ssub.s32 %s15, 1
        // Predicated region
        $region13: #{tpu_custom_call.1} parent=11 // pred_check
          %p251 = pneg %p126
        $region14: #{tpu_custom_call.1} parent=11 // pred_check_branch
          %253 = sbr.rel (%p251) target = $region16
        $region15: #{tpu_custom_call.1} parent=11 // pred_region
          _
        $region16: #{tpu_custom_call.1} parent=11 // pred_fallthru
          _
        // Predicated region
        $region17: #{tpu_custom_call.1} parent=11 // pred_check
          %p254 = pneg %p147
        $region18: #{tpu_custom_call.1} parent=11 // pred_check_branch
          %256 = sbr.rel (%p254) target = $region20
        $region19: #{tpu_custom_call.1} parent=11 // pred_region
          _
        $region20: #{tpu_custom_call.1} parent=11 // pred_fallthru
          _
        // Predicated region
        $region21: #{tpu_custom_call.1} parent=11 // pred_check
          %p257 = pneg %p168
        $region22: #{tpu_custom_call.1} parent=11 // pred_check_branch
          %259 = sbr.rel (%p257) target = $region24
        $region23: #{tpu_custom_call.1} parent=11 // pred_region
          _
        $region24: #{tpu_custom_call.1} parent=11 // pred_fallthru
          _
        // Predicated region
        $region25: #{tpu_custom_call.1} parent=11 // pred_check
          %p260 = pneg %p189
        $region26: #{tpu_custom_call.1} parent=11 // pred_check_branch
          %262 = sbr.rel (%p260) target = $region28
        $region27: #{tpu_custom_call.1} parent=11 // pred_region
          _
        $region28: #{tpu_custom_call.1} parent=11 // pred_fallthru
          _
        // Predicated region
        $region29: #{tpu_custom_call.1} parent=11 // pred_check
          %p263 = pneg %p210
        $region30: #{tpu_custom_call.1} parent=11 // pred_check_branch
          %265 = sbr.rel (%p263) target = $region32
        $region31: #{tpu_custom_call.1} parent=11 // pred_region
          _
        $region32: #{tpu_custom_call.1} parent=11 // pred_fallthru
          _
      $region12: #{tpu_custom_call.1} parent=5 // pred_fallthru
        _
      %p266 = scmp.lt.s32.totalorder %s15, 2
      // Predicated region
      $region33: #{tpu_custom_call.1} parent=5 // pred_check
        %p267 = pneg %p266
      $region34: #{tpu_custom_call.1} parent=5 // pred_check_branch
        %269 = sbr.rel (%p267) target = $region36
      $region35: #{tpu_custom_call.1} parent=5 // pred_region
        // Predicated region
        $region37: #{tpu_custom_call.1} parent=35 // pred_check
          %p270 = pneg %p47
        $region38: #{tpu_custom_call.1} parent=35 // pred_check_branch
          %272 = sbr.rel (%p270) target = $region40
        $region39: #{tpu_custom_call.1} parent=35 // pred_region
          %p273 = scmp.lt.s32.totalorder %s23, 1
          %s274 = scalar_select %p273, %s23, 1
          %s275 = scalar_lea.vmem %s0, %s274
        $region40: #{tpu_custom_call.1} parent=35 // pred_fallthru
          _
        // Predicated region
        $region41: #{tpu_custom_call.1} parent=35 // pred_check
          %p276 = pneg %p73
        $region42: #{tpu_custom_call.1} parent=35 // pred_check_branch
          %278 = sbr.rel (%p276) target = $region44
        $region43: #{tpu_custom_call.1} parent=35 // pred_region
          %s279 = smul.u32 16, %s23
          %p280 = scmp.lt.s32.totalorder %s279, 31
          %s281 = scalar_select %p280, %s279, 31
          %s282 = smul.addr %s281, 8
          %s283 = scalar_lea.vmem %s1, %s282
          %s284 = smul.u32 16, %s23
        $region44: #{tpu_custom_call.1} parent=35 // pred_fallthru
          _
        // Predicated region
        $region45: #{tpu_custom_call.1} parent=35 // pred_check
          %p285 = pneg %p99
        $region46: #{tpu_custom_call.1} parent=35 // pred_check_branch
          %287 = sbr.rel (%p285) target = $region48
        $region47: #{tpu_custom_call.1} parent=35 // pred_region
          %s288 = smul.u32 16, %s23
          %p289 = scmp.lt.s32.totalorder %s288, 31
          %s290 = scalar_select %p289, %s288, 31
          %s291 = smul.addr %s290, 8
          %s292 = scalar_lea.vmem %s2, %s291
          %s293 = smul.u32 16, %s23
        $region48: #{tpu_custom_call.1} parent=35 // pred_fallthru
          _
      $region36: #{tpu_custom_call.1} parent=5 // pred_fallthru
        _
      %p294 = scmp.le.s32.totalorder 1, %s15
      %p295 = scmp.lt.s32.totalorder %s15, 3
      %p296 = pnand %p294, %p295
      %p297 = pneg %p296
      // Predicated region
      $region49: #{tpu_custom_call.1} parent=5 // pred_check
        _
      $region50: #{tpu_custom_call.1} parent=5 // pred_check_branch
        %299 = sbr.rel (%p296) target = $region52
      $region51: #{tpu_custom_call.1} parent=5 // pred_region
        %s300 = ssub.s32 %s15, 1
        %p301 = scmp.lt.s32.totalorder %s25, 1
        %s302 = scalar_select %p301, %s25, 1
        %s303 = scalar_lea.vmem %s0, %s302
        %p304 = pneg %p53
        %p305 = pneg %p50
        %s306 = smul.u32 16, %s25
        %p307 = scmp.lt.s32.totalorder %s306, 31
        %s308 = scalar_select %p307, %s306, 31
        %s309 = smul.addr %s308, 8
        %s310 = scalar_lea.vmem %s1, %s309
        %p311 = pneg %p79
        %p312 = pneg %p76
        %s313 = smul.u32 16, %s25
        %p314 = scmp.lt.s32.totalorder %s313, 31
        %s315 = scalar_select %p314, %s313, 31
        %s316 = smul.addr %s315, 8
        %s317 = scalar_lea.vmem %s2, %s316
        %p318 = pneg %p105
        %p319 = pneg %p102
        %p320 = pneg %p126
        %p321 = pneg %p123
        %p322 = pneg %p147
        %p323 = pneg %p144
        %p324 = pneg %p168
        %p325 = pneg %p165
        %p326 = pneg %p189
        %p327 = pneg %p186
        %p328 = pneg %p210
        %p329 = pneg %p207
        %p330 = pneg %p236
        %p331 = pneg %p233
        %p332 = scmp.lt.s32.totalorder %s25, 1
        %s333 = scalar_select %p332, %s25, 1
        %s334 = scalar_lea.vmem %s0, %s333
        %s335 = smul.u32 16, %s25
        %p336 = scmp.lt.s32.totalorder %s335, 31
        %s337 = scalar_select %p336, %s335, 31
        %s338 = smul.addr %s337, 8
        %s339 = scalar_lea.vmem %s1, %s338
        %s340 = smul.u32 16, %s25
        %s341 = smul.u32 16, %s25
        %p342 = scmp.lt.s32.totalorder %s341, 31
        %s343 = scalar_select %p342, %s341, 31
        %s344 = smul.addr %s343, 8
        %s345 = scalar_lea.vmem %s2, %s344
        %s346 = smul.u32 16, %s25
        %s347 = smul.u32 2, %s24
        %p348 = scmp.eq.s32.totalorder %s25, 0
        // Predicated region
        $region53: #{tpu_custom_call.1} parent=51 // pred_check
          %p349 = pneg %p348
        $region54: #{tpu_custom_call.1} parent=51 // pred_check_branch
          %351 = sbr.rel (%p349) target = $region56
        $region55: #{tpu_custom_call.1} parent=51 // pred_region
          %352 = vst [vmem:[#allocation2] sm:$0xff] 0.0
          %vm353 = vcmask 203776
          %354 = vst.msk [vmem:[#allocation2 + $0x8] sm:$0xff] %vm353, 0.0
          %355 = vst [vmem:[#allocation2 + $0x10] sm:$0xff] 0.0
          %356 = vst.msk [vmem:[#allocation2 + $0x18] sm:$0xff] %vm353, 0.0
        $region56: #{tpu_custom_call.1} parent=51 // pred_fallthru
          _
        %s357 = smul.u32 %s24, 16
        %v358 = vlaneseq
        %v359 = vshrl.u32 %v358, 7
        %v360 = vadd.s32 %v359, 8
        %v361 = vstv %s357
        %v362 = vadd.s32 %v359, %v361
        %v363 = vadd.s32 %v360, %v361
        %v364 = vld [vmem:[%s334] sm:$0x1]
        %v365 = vlaneseq
        %v366 = vshrl.u32 %v365, 7
        %v367 = vsub.s32 0, %v366
        %v368 = vrot.slane %v364, %v367
        %vm369 = vcmp.eq.s32.totalorder %v362, %v368
        %vm370 = vcmp.eq.s32.totalorder %v363, %v368
        %v371 = vsel %vm369, 1, 0
        %v372 = vsel %vm370, 1, 0
        %v373 = vcvt.s32.f32 %v371
        %v374 = vcvt.s32.f32 %v372
        %v375 = vld [vmem:[%s345] sm:$0xff]
        %v376 = vld [vmem:[%s345 + $0x8] sm:$0xff]
        %v377 = vld [vmem:[%s345 + $0x10] sm:$0xff]
        %v378 = vld [vmem:[%s345 + $0x18] sm:$0xff]
        %v379 = vld [vmem:[%s345 + $0x20] sm:$0xff]
        %v380 = vld [vmem:[%s345 + $0x28] sm:$0xff]
        %v381 = vld [vmem:[%s345 + $0x30] sm:$0xff]
        %v382 = vld [vmem:[%s345 + $0x38] sm:$0xff]
        %v383 = vld [vmem:[%s345 + $0x40] sm:$0xff]
        %v384 = vld [vmem:[%s345 + $0x48] sm:$0xff]
        %v385 = vld [vmem:[%s345 + $0x50] sm:$0xff]
        %v386 = vld [vmem:[%s345 + $0x58] sm:$0xff]
        %v387 = vld [vmem:[%s345 + $0x60] sm:$0xff]
        %v388 = vld [vmem:[%s345 + $0x68] sm:$0xff]
        %v389 = vld [vmem:[%s345 + $0x70] sm:$0xff]
        %v390 = vld [vmem:[%s345 + $0x78] sm:$0xff]
        %v391 = vld [vmem:[%s3] sm:$0xff]
        %v392 = vld [vmem:[%s3 + $0x8] sm:$0xff]
        %v393 = vld [vmem:[%s3 + $0x10] sm:$0xff]
        %v394 = vld [vmem:[%s3 + $0x18] sm:$0xff]
        %v395 = vld [vmem:[%s4] sm:$0x1]
        %v397 = vlaneseq
        %v398 = vshrl.u32 %v397, 7
        %v399 = vsub.s32 0, %v398
        %v400 = vrot.slane %v395, %v399
        %vm402 = vcmask 261120
        %v404 = vsel %vm402, %v375, 0
        %v407 = vsel %vm402, %v376, 0
        %v410 = vsel %vm402, %v377, 0
        %v413 = vsel %vm402, %v378, 0
        %v416 = vsel %vm402, %v379, 0
        %v419 = vsel %vm402, %v380, 0
        %v422 = vsel %vm402, %v381, 0
        %v425 = vsel %vm402, %v382, 0
        %v428 = vsel %vm402, %v383, 0
        %v431 = vsel %vm402, %v384, 0
        %v434 = vsel %vm402, %v385, 0
        %v437 = vsel %vm402, %v386, 0
        %v440 = vsel %vm402, %v387, 0
        %v443 = vsel %vm402, %v388, 0
        %v446 = vsel %vm402, %v389, 0
        %v449 = vsel %vm402, %v390, 0
        %451 = vmatprep.subr.mxu0 0.0
        %452 = vmatpush1.msra.mxu0 0.0
        %453 = vmatprep.subr.mxu0 0.0
        %454 = vmatpush1.msra.mxu0 0.0
        %455 = vmatprep.subr.mxu0 0.0
        %456 = vmatpush1.msra.mxu0 0.0
        %457 = vmatprep.subr.mxu0 0.0
        %458 = vmatpush1.msra.mxu0 0.0
        %459 = vmatprep.subr.mxu0 0.0
        %460 = vmatpush1.msra.mxu0 0.0
        %461 = vmatprep.subr.mxu0 0.0
        %462 = vmatpush1.msra.mxu0 0.0
        %463 = vmatprep.subr.mxu0 0.0
        %464 = vmatpush1.msra.mxu0 0.0
        %465 = vmatprep.subr.mxu0 0.0
        %466 = vmatpush1.msra.mxu0 0.0
        %467 = vmatprep.subr.mxu0 0.0
        %468 = vmatpush1.msra.mxu0 0.0
        %469 = vmatprep.subr.mxu0 0.0
        %470 = vmatpush1.msra.mxu0 0.0
        %471 = vmatprep.subr.mxu0 0.0
        %472 = vmatpush1.msra.mxu0 0.0
        %473 = vmatprep.subr.mxu0 0.0
        %474 = vmatpush1.msra.mxu0 0.0
        %475 = vmatprep.subr.mxu0 0.0
        %476 = vmatpush1.msra.mxu0 %v394
        %477 = vmatprep.subr.mxu0 0.0
        %478 = vmatpush1.msra.mxu0 %v393
        %479 = vmatprep.subr.mxu0 0.0
        %480 = vmatpush1.msra.mxu0 %v392
        %481 = vmatprep.subr.mxu0 0.0
        %482 = vmatpush1.msra.mxu0 %v391
        %483 = vmatprep.subr.mxu0 0.0
        %484 = vmatpush2.msra.mxu0 0.0
        %485 = vmatprep.subr.mxu0 0.0
        %486 = vmatpush2.msra.mxu0 0.0
        %487 = vmatprep.subr.mxu0 0.0
        %488 = vmatpush2.msra.mxu0 0.0
        %489 = vmatprep.subr.mxu0 0.0
        %490 = vmatpush2.msra.mxu0 0.0
        %491 = vmatprep.subr.mxu0 0.0
        %492 = vmatpush2.msra.mxu0 0.0
        %493 = vmatprep.subr.mxu0 0.0
        %494 = vmatpush2.msra.mxu0 0.0
        %495 = vmatprep.subr.mxu0 0.0
        %496 = vmatpush2.msra.mxu0 0.0
        %497 = vmatprep.subr.mxu0 0.0
        %498 = vmatpush2.msra.mxu0 0.0
        %499 = vmatprep.subr.mxu0 0.0
        %500 = vmatpush2.msra.mxu0 0.0
        %501 = vmatprep.subr.mxu0 0.0
        %502 = vmatpush2.msra.mxu0 0.0
        %503 = vmatprep.subr.mxu0 0.0
        %504 = vmatpush2.msra.mxu0 0.0
        %505 = vmatprep.subr.mxu0 0.0
        %506 = vmatpush2.msra.mxu0 0.0
        %507 = vmatprep.subr.mxu0 0.0
        %508 = vmatpush2.msra.mxu0 0.0
        %509 = vmatprep.subr.mxu0 0.0
        %510 = vmatpush2.msra.mxu0 0.0
        %511 = vmatprep.subr.mxu0 0.0
        %512 = vmatpush2.msra.mxu0 0.0
        %513 = vmatprep.subr.mxu0 0.0
        %514 = vmatpush2.msra.mxu0 0.0
        %515 = vmatprep.mubr.f32.mxu0 0.0
        %516 = vmatmul.mubr.f32.gmra.mxu0 %v404
        %v517 = vpop.f32.mrf.mxu0
        %v518 = vadd.f32 %v400, %v517
        %v519 = vpop.f32.mrf.mxu0
        %520 = vmatprep.mubr.f32.mxu0 0.0
        %521 = vmatmul.mubr.f32.gmra.mxu0 %v407
        %v522 = vpop.f32.mrf.mxu0
        %v523 = vadd.f32 %v400, %v522
        %v524 = vpop.f32.mrf.mxu0
        %525 = vmatprep.mubr.f32.mxu0 0.0
        %526 = vmatmul.mubr.f32.gmra.mxu0 %v410
        %v527 = vpop.f32.mrf.mxu0
        %v528 = vadd.f32 %v400, %v527
        %v529 = vpop.f32.mrf.mxu0
        %530 = vmatprep.mubr.f32.mxu0 0.0
        %531 = vmatmul.mubr.f32.gmra.mxu0 %v413
        %v532 = vpop.f32.mrf.mxu0
        %v533 = vadd.f32 %v400, %v532
        %v534 = vpop.f32.mrf.mxu0
        %535 = vmatprep.mubr.f32.mxu0 0.0
        %536 = vmatmul.mubr.f32.gmra.mxu0 %v416
        %v537 = vpop.f32.mrf.mxu0
        %v538 = vadd.f32 %v400, %v537
        %v539 = vpop.f32.mrf.mxu0
        %540 = vmatprep.mubr.f32.mxu0 0.0
        %541 = vmatmul.mubr.f32.gmra.mxu0 %v419
        %v542 = vpop.f32.mrf.mxu0
        %v543 = vadd.f32 %v400, %v542
        %v544 = vpop.f32.mrf.mxu0
        %545 = vmatprep.mubr.f32.mxu0 0.0
        %546 = vmatmul.mubr.f32.gmra.mxu0 %v422
        %v547 = vpop.f32.mrf.mxu0
        %v548 = vadd.f32 %v400, %v547
        %v549 = vpop.f32.mrf.mxu0
        %550 = vmatprep.mubr.f32.mxu0 0.0
        %551 = vmatmul.mubr.f32.gmra.mxu0 %v425
        %v552 = vpop.f32.mrf.mxu0
        %v553 = vadd.f32 %v400, %v552
        %v554 = vpop.f32.mrf.mxu0
        %555 = vmatprep.mubr.f32.mxu0 0.0
        %556 = vmatmul.mubr.f32.gmra.mxu0 %v428
        %v557 = vpop.f32.mrf.mxu0
        %v558 = vadd.f32 %v400, %v557
        %v559 = vpop.f32.mrf.mxu0
        %560 = vmatprep.mubr.f32.mxu0 0.0
        %561 = vmatmul.mubr.f32.gmra.mxu0 %v431
        %v562 = vpop.f32.mrf.mxu0
        %v563 = vadd.f32 %v400, %v562
        %v564 = vpop.f32.mrf.mxu0
        %565 = vmatprep.mubr.f32.mxu0 0.0
        %566 = vmatmul.mubr.f32.gmra.mxu0 %v434
        %v567 = vpop.f32.mrf.mxu0
        %v568 = vadd.f32 %v400, %v567
        %v569 = vpop.f32.mrf.mxu0
        %570 = vmatprep.mubr.f32.mxu0 0.0
        %571 = vmatmul.mubr.f32.gmra.mxu0 %v437
        %v572 = vpop.f32.mrf.mxu0
        %v573 = vadd.f32 %v400, %v572
        %v574 = vpop.f32.mrf.mxu0
        %575 = vmatprep.mubr.f32.mxu0 0.0
        %576 = vmatmul.mubr.f32.gmra.mxu0 %v440
        %v577 = vpop.f32.mrf.mxu0
        %v578 = vadd.f32 %v400, %v577
        %v579 = vpop.f32.mrf.mxu0
        %580 = vmatprep.mubr.f32.mxu0 0.0
        %581 = vmatmul.mubr.f32.gmra.mxu0 %v443
        %v582 = vpop.f32.mrf.mxu0
        %v583 = vadd.f32 %v400, %v582
        %v584 = vpop.f32.mrf.mxu0
        %585 = vmatprep.mubr.f32.mxu0 0.0
        %586 = vmatmul.mubr.f32.gmra.mxu0 %v446
        %v587 = vpop.f32.mrf.mxu0
        %v588 = vadd.f32 %v400, %v587
        %v589 = vpop.f32.mrf.mxu0
        %590 = vmatprep.mubr.f32.mxu0 0.0
        %591 = vmatmul.mubr.f32.gmra.mxu0 %v449
        %v592 = vpop.f32.mrf.mxu0
        %v593 = vadd.f32 %v400, %v592
        %v594 = vpop.f32.mrf.mxu0
        %595 = vdwg.mxu0
        %v596 = vld [vmem:[%s339] sm:$0xff]
        %v597 = vld [vmem:[%s339 + $0x8] sm:$0xff]
        %v598 = vld [vmem:[%s339 + $0x10] sm:$0xff]
        %v599 = vld [vmem:[%s339 + $0x18] sm:$0xff]
        %v600 = vld [vmem:[%s339 + $0x20] sm:$0xff]
        %v601 = vld [vmem:[%s339 + $0x28] sm:$0xff]
        %v602 = vld [vmem:[%s339 + $0x30] sm:$0xff]
        %v603 = vld [vmem:[%s339 + $0x38] sm:$0xff]
        %v604 = vld [vmem:[%s339 + $0x40] sm:$0xff]
        %v605 = vld [vmem:[%s339 + $0x48] sm:$0xff]
        %v606 = vld [vmem:[%s339 + $0x50] sm:$0xff]
        %v607 = vld [vmem:[%s339 + $0x58] sm:$0xff]
        %v608 = vld [vmem:[%s339 + $0x60] sm:$0xff]
        %v609 = vld [vmem:[%s339 + $0x68] sm:$0xff]
        %v610 = vld [vmem:[%s339 + $0x70] sm:$0xff]
        %v611 = vld [vmem:[%s339 + $0x78] sm:$0xff]
        %628 = vrot.lane.b32.xlu0 %v596, 1
        %v629 = vpop.permute.xlu0 %628
        %630 = vrot.lane.b32.xlu0 %v597, 1
        %v631 = vpop.permute.xlu0 %630
        %632 = vrot.lane.b32.xlu0 %v598, 1
        %v633 = vpop.permute.xlu0 %632
        %634 = vrot.lane.b32.xlu0 %v599, 1
        %v635 = vpop.permute.xlu0 %634
        %636 = vrot.lane.b32.xlu0 %v600, 1
        %v637 = vpop.permute.xlu0 %636
        %638 = vrot.lane.b32.xlu0 %v601, 1
        %v639 = vpop.permute.xlu0 %638
        %640 = vrot.lane.b32.xlu0 %v602, 1
        %v641 = vpop.permute.xlu0 %640
        %642 = vrot.lane.b32.xlu0 %v603, 1
        %v643 = vpop.permute.xlu0 %642
        %644 = vrot.lane.b32.xlu0 %v604, 1
        %v645 = vpop.permute.xlu0 %644
        %646 = vrot.lane.b32.xlu0 %v605, 1
        %v647 = vpop.permute.xlu0 %646
        %648 = vrot.lane.b32.xlu0 %v606, 1
        %v649 = vpop.permute.xlu0 %648
        %650 = vrot.lane.b32.xlu0 %v607, 1
        %v651 = vpop.permute.xlu0 %650
        %652 = vrot.lane.b32.xlu0 %v608, 1
        %v653 = vpop.permute.xlu0 %652
        %654 = vrot.lane.b32.xlu0 %v609, 1
        %v655 = vpop.permute.xlu0 %654
        %656 = vrot.lane.b32.xlu0 %v610, 1
        %v657 = vpop.permute.xlu0 %656
        %658 = vrot.lane.b32.xlu0 %v611, 1
        %v659 = vpop.permute.xlu0 %658
        %692 = vrot.lane.b32.xlu0 %v518, 25
        %v693 = vpop.permute.xlu0 %692
        %694 = vrot.lane.b32.xlu0 %v523, 25
        %v695 = vpop.permute.xlu0 %694
        %696 = vrot.lane.b32.xlu0 %v528, 25
        %v697 = vpop.permute.xlu0 %696
        %698 = vrot.lane.b32.xlu0 %v533, 25
        %v699 = vpop.permute.xlu0 %698
        %700 = vrot.lane.b32.xlu0 %v538, 25
        %v701 = vpop.permute.xlu0 %700
        %702 = vrot.lane.b32.xlu0 %v543, 25
        %v703 = vpop.permute.xlu0 %702
        %704 = vrot.lane.b32.xlu0 %v548, 25
        %v705 = vpop.permute.xlu0 %704
        %706 = vrot.lane.b32.xlu0 %v553, 25
        %v707 = vpop.permute.xlu0 %706
        %708 = vrot.lane.b32.xlu0 %v558, 25
        %v709 = vpop.permute.xlu0 %708
        %710 = vrot.lane.b32.xlu0 %v563, 25
        %v711 = vpop.permute.xlu0 %710
        %712 = vrot.lane.b32.xlu0 %v568, 25
        %v713 = vpop.permute.xlu0 %712
        %714 = vrot.lane.b32.xlu0 %v573, 25
        %v715 = vpop.permute.xlu0 %714
        %716 = vrot.lane.b32.xlu0 %v578, 25
        %v717 = vpop.permute.xlu0 %716
        %718 = vrot.lane.b32.xlu0 %v583, 25
        %v719 = vpop.permute.xlu0 %718
        %720 = vrot.lane.b32.xlu0 %v588, 25
        %v721 = vpop.permute.xlu0 %720
        %722 = vrot.lane.b32.xlu0 %v593, 25
        %v723 = vpop.permute.xlu0 %722
        %vm740 = vcmask 7168
        %v741 = vsel %vm740, 1.0, %v629
        %v742 = vsel %vm740, 1.0, %v631
        %v743 = vsel %vm740, 1.0, %v633
        %v744 = vsel %vm740, 1.0, %v635
        %v745 = vsel %vm740, 1.0, %v637
        %v746 = vsel %vm740, 1.0, %v639
        %v747 = vsel %vm740, 1.0, %v641
        %v748 = vsel %vm740, 1.0, %v643
        %v749 = vsel %vm740, 1.0, %v645
        %v750 = vsel %vm740, 1.0, %v647
        %v751 = vsel %vm740, 1.0, %v649
        %v752 = vsel %vm740, 1.0, %v651
        %v753 = vsel %vm740, 1.0, %v653
        %v754 = vsel %vm740, 1.0, %v655
        %v755 = vsel %vm740, 1.0, %v657
        %v756 = vsel %vm740, 1.0, %v659
        %vm757 = vcmask 203776
        %v758 = vsel %vm757, %v741, %v693
        %v759 = vsel %vm757, %v742, %v695
        %v760 = vsel %vm757, %v743, %v697
        %v761 = vsel %vm757, %v744, %v699
        %v762 = vsel %vm757, %v745, %v701
        %v763 = vsel %vm757, %v746, %v703
        %v764 = vsel %vm757, %v747, %v705
        %v765 = vsel %vm757, %v748, %v707
        %v766 = vsel %vm757, %v749, %v709
        %v767 = vsel %vm757, %v750, %v711
        %v768 = vsel %vm757, %v751, %v713
        %v769 = vsel %vm757, %v752, %v715
        %v770 = vsel %vm757, %v753, %v717
        %v771 = vsel %vm757, %v754, %v719
        %v772 = vsel %vm757, %v755, %v721
        %v773 = vsel %vm757, %v756, %v723
        %v774 = vld [vmem:[#allocation2] sm:$0xff]
        %v775 = vld [vmem:[#allocation2 + $0x8] sm:$0xff]
        %v776 = vld [vmem:[#allocation2 + $0x10] sm:$0xff]
        %v777 = vld [vmem:[#allocation2 + $0x18] sm:$0xff]
        %778 = vmatprep.subr.mxu0 %v723
        %779 = vmatpush1.msra.mxu0 %v773
        %780 = vmatprep.subr.mxu0 %v721
        %781 = vmatpush1.msra.mxu0 %v772
        %782 = vmatprep.subr.mxu0 %v719
        %783 = vmatpush1.msra.mxu0 %v771
        %784 = vmatprep.subr.mxu0 %v717
        %785 = vmatpush1.msra.mxu0 %v770
        %786 = vmatprep.subr.mxu0 %v715
        %787 = vmatpush1.msra.mxu0 %v769
        %788 = vmatprep.subr.mxu0 %v713
        %789 = vmatpush1.msra.mxu0 %v768
        %790 = vmatprep.subr.mxu0 %v711
        %791 = vmatpush1.msra.mxu0 %v767
        %792 = vmatprep.subr.mxu0 %v709
        %793 = vmatpush1.msra.mxu0 %v766
        %794 = vmatprep.subr.mxu0 %v707
        %795 = vmatpush1.msra.mxu0 %v765
        %796 = vmatprep.subr.mxu0 %v705
        %797 = vmatpush1.msra.mxu0 %v764
        %798 = vmatprep.subr.mxu0 %v703
        %799 = vmatpush1.msra.mxu0 %v763
        %800 = vmatprep.subr.mxu0 %v701
        %801 = vmatpush1.msra.mxu0 %v762
        %802 = vmatprep.subr.mxu0 %v699
        %803 = vmatpush1.msra.mxu0 %v761
        %804 = vmatprep.subr.mxu0 %v697
        %805 = vmatpush1.msra.mxu0 %v760
        %806 = vmatprep.subr.mxu0 %v695
        %807 = vmatpush1.msra.mxu0 %v759
        %808 = vmatprep.subr.mxu0 %v693
        %809 = vmatpush1.msra.mxu0 %v758
        %810 = vmatprep.subr.mxu0 0.0
        %811 = vmatpush2.msra.mxu0 0.0
        %812 = vmatprep.subr.mxu0 0.0
        %813 = vmatpush2.msra.mxu0 0.0
        %814 = vmatprep.subr.mxu0 0.0
        %815 = vmatpush2.msra.mxu0 0.0
        %816 = vmatprep.subr.mxu0 0.0
        %817 = vmatpush2.msra.mxu0 0.0
        %818 = vmatprep.subr.mxu0 0.0
        %819 = vmatpush2.msra.mxu0 0.0
        %820 = vmatprep.subr.mxu0 0.0
        %821 = vmatpush2.msra.mxu0 0.0
        %822 = vmatprep.subr.mxu0 0.0
        %823 = vmatpush2.msra.mxu0 0.0
        %824 = vmatprep.subr.mxu0 0.0
        %825 = vmatpush2.msra.mxu0 0.0
        %826 = vmatprep.subr.mxu0 0.0
        %827 = vmatpush2.msra.mxu0 0.0
        %828 = vmatprep.subr.mxu0 0.0
        %829 = vmatpush2.msra.mxu0 0.0
        %830 = vmatprep.subr.mxu0 0.0
        %831 = vmatpush2.msra.mxu0 0.0
        %832 = vmatprep.subr.mxu0 0.0
        %833 = vmatpush2.msra.mxu0 0.0
        %834 = vmatprep.subr.mxu0 0.0
        %835 = vmatpush2.msra.mxu0 0.0
        %836 = vmatprep.subr.mxu0 0.0
        %837 = vmatpush2.msra.mxu0 0.0
        %838 = vmatprep.subr.mxu0 0.0
        %839 = vmatpush2.msra.mxu0 0.0
        %840 = vmatprep.subr.mxu0 0.0
        %841 = vmatpush2.msra.mxu0 0.0
        %842 = vmatprep.mubr.f32.mxu0 0.0
        %843 = vmatmul.mubr.f32.gmra.mxu0 %v373
        %v844 = vpop.f32.mrf.mxu0
        %v845 = vadd.f32 0.0, %v844
        %v846 = vpop.f32.mrf.mxu0
        %v847 = vadd.f32 0.0, %v846
        %848 = vmatprep.mubr.f32.mxu0 0.0
        %849 = vmatmul.mubr.f32.gmra.mxu0 %v374
        %v850 = vpop.f32.mrf.mxu0
        %v851 = vadd.f32 0.0, %v850
        %v852 = vpop.f32.mrf.mxu0
        %v853 = vadd.f32 0.0, %v852
        %854 = vdwg.mxu0
        %v855 = vadd.f32 %v774, %v845
        %v856 = vadd.f32 %v775, %v847
        %v857 = vadd.f32 %v776, %v851
        %v858 = vadd.f32 %v777, %v853
        %859 = vst [vmem:[#allocation2] sm:$0xff] %v855
        %860 = vst.msk [vmem:[#allocation2 + $0x8] sm:$0xff] %vm757, %v856
        %861 = vst [vmem:[#allocation2 + $0x10] sm:$0xff] %v857
        %862 = vst.msk [vmem:[#allocation2 + $0x18] sm:$0xff] %vm757, %v858
        %p863 = scmp.eq.s32.totalorder %s25, 1
        // Predicated region
        $region57: #{tpu_custom_call.1} parent=51 // pred_check
          %p864 = pneg %p863
        $region58: #{tpu_custom_call.1} parent=51 // pred_check_branch
          %866 = sbr.rel (%p864) target = $region60
        $region59: #{tpu_custom_call.1} parent=51 // pred_region
          %v867 = vld [vmem:[#allocation2] sm:$0xff]
          %v868 = vld [vmem:[#allocation2 + $0x8] sm:$0xff]
          %v869 = vld [vmem:[#allocation2 + $0x10] sm:$0xff]
          %v870 = vld [vmem:[#allocation2 + $0x18] sm:$0xff]
          %v871 = vmax.f32 %v867, 1.0
          %v872 = vmax.f32 %v869, 1.0
          %v873 = vrcp.pop %v871
          %v874 = vrcp.pop %v872
          %876 = vset.pattern.permute.xlu0 0
          %877 = vperm.xlu0 %876, %v873
          %v878 = vpop.permute.xlu0 %877
          %881 = vset.pattern.permute.xlu0 0
          %882 = vperm.xlu0 %881, %v874
          %v883 = vpop.permute.xlu0 %882
          %v885 = vmul.f32 %v867, %v878
          %v886 = vmul.f32 %v869, %v883
          %v887 = vmax.f32 %v867, 0.0
          %v888 = vmax.f32 %v868, 0.0
          %v889 = vmax.f32 %v869, 0.0
          %v890 = vmax.f32 %v870, 0.0
          %v891 = vld [vmem:[%s5] sm:$0xff]
          %v892 = vld [vmem:[%s5 + $0x8] sm:$0xff]
          %v893 = vld [vmem:[%s5 + $0x10] sm:$0xff]
          %v894 = vld [vmem:[%s5 + $0x18] sm:$0xff]
          %v895 = vld [vmem:[%s5 + $0x20] sm:$0xff]
          %v896 = vld [vmem:[%s5 + $0x28] sm:$0xff]
          %v897 = vld [vmem:[%s5 + $0x30] sm:$0xff]
          %v898 = vld [vmem:[%s5 + $0x38] sm:$0xff]
          %v899 = vld [vmem:[%s5 + $0x40] sm:$0xff]
          %v900 = vld [vmem:[%s5 + $0x48] sm:$0xff]
          %v901 = vld [vmem:[%s5 + $0x50] sm:$0xff]
          %v902 = vld [vmem:[%s5 + $0x58] sm:$0xff]
          %v903 = vld [vmem:[%s5 + $0x60] sm:$0xff]
          %v904 = vld [vmem:[%s5 + $0x68] sm:$0xff]
          %v905 = vld [vmem:[%s5 + $0x70] sm:$0xff]
          %v906 = vld [vmem:[%s5 + $0x78] sm:$0xff]
          %v907 = vld [vmem:[%s6] sm:$0xff]
          %v908 = vld [vmem:[%s6 + $0x8] sm:$0xff]
          %v909 = vld [vmem:[%s6 + $0x10] sm:$0xff]
          %912 = vrot.lane.b32.xlu0 %v885, 127
          %v913 = vpop.permute.xlu0 %912
          %914 = vrot.lane.b32.xlu0 %v886, 127
          %v915 = vpop.permute.xlu0 %914
          %vm916 = vcmask 195584
          %v917 = vsel %vm916, %v913, 0
          %v919 = vsel %vm916, %v915, 0
          %921 = vmatprep.subr.mxu0 0.0
          %922 = vmatpush1.msra.mxu0 0.0
          %923 = vmatprep.subr.mxu0 0.0
          %924 = vmatpush1.msra.mxu0 0.0
          %925 = vmatprep.subr.mxu0 0.0
          %926 = vmatpush1.msra.mxu0 0.0
          %927 = vmatprep.subr.mxu0 0.0
          %928 = vmatpush1.msra.mxu0 0.0
          %929 = vmatprep.subr.mxu0 0.0
          %930 = vmatpush1.msra.mxu0 0.0
          %931 = vmatprep.subr.mxu0 0.0
          %932 = vmatpush1.msra.mxu0 0.0
          %933 = vmatprep.subr.mxu0 0.0
          %934 = vmatpush1.msra.mxu0 0.0
          %935 = vmatprep.subr.mxu0 0.0
          %936 = vmatpush1.msra.mxu0 0.0
          %937 = vmatprep.subr.mxu0 0.0
          %938 = vmatpush1.msra.mxu0 0.0
          %939 = vmatprep.subr.mxu0 0.0
          %940 = vmatpush1.msra.mxu0 0.0
          %941 = vmatprep.subr.mxu0 0.0
          %942 = vmatpush1.msra.mxu0 0.0
          %943 = vmatprep.subr.mxu0 0.0
          %944 = vmatpush1.msra.mxu0 0.0
          %945 = vmatprep.subr.mxu0 0.0
          %946 = vmatpush1.msra.mxu0 0.0
          %947 = vmatprep.subr.mxu0 0.0
          %948 = vmatpush1.msra.mxu0 %v909
          %949 = vmatprep.subr.mxu0 0.0
          %950 = vmatpush1.msra.mxu0 %v908
          %951 = vmatprep.subr.mxu0 0.0
          %952 = vmatpush1.msra.mxu0 %v907
          %953 = vmatprep.subr.mxu0 0.0
          %954 = vmatpush2.msra.mxu0 0.0
          %955 = vmatprep.subr.mxu0 0.0
          %956 = vmatpush2.msra.mxu0 0.0
          %957 = vmatprep.subr.mxu0 0.0
          %958 = vmatpush2.msra.mxu0 0.0
          %959 = vmatprep.subr.mxu0 0.0
          %960 = vmatpush2.msra.mxu0 0.0
          %961 = vmatprep.subr.mxu0 0.0
          %962 = vmatpush2.msra.mxu0 0.0
          %963 = vmatprep.subr.mxu0 0.0
          %964 = vmatpush2.msra.mxu0 0.0
          %965 = vmatprep.subr.mxu0 0.0
          %966 = vmatpush2.msra.mxu0 0.0
          %967 = vmatprep.subr.mxu0 0.0
          %968 = vmatpush2.msra.mxu0 0.0
          %969 = vmatprep.subr.mxu0 0.0
          %970 = vmatpush2.msra.mxu0 0.0
          %971 = vmatprep.subr.mxu0 0.0
          %972 = vmatpush2.msra.mxu0 0.0
          %973 = vmatprep.subr.mxu0 0.0
          %974 = vmatpush2.msra.mxu0 0.0
          %975 = vmatprep.subr.mxu0 0.0
          %976 = vmatpush2.msra.mxu0 0.0
          %977 = vmatprep.subr.mxu0 0.0
          %978 = vmatpush2.msra.mxu0 0.0
          %979 = vmatprep.subr.mxu0 0.0
          %980 = vmatpush2.msra.mxu0 0.0
          %981 = vmatprep.subr.mxu0 0.0
          %982 = vmatpush2.msra.mxu0 0.0
          %983 = vmatprep.subr.mxu0 0.0
          %984 = vmatpush2.msra.mxu0 0.0
          %985 = vmatprep.mubr.f32.mxu0 0.0
          %986 = vmatmul.mubr.f32.gmra.mxu0 %v917
          %v987 = vpop.f32.mrf.mxu0
          %v988 = vadd.f32 0.0, %v987
          %v989 = vpop.f32.mrf.mxu0
          %990 = vmatprep.mubr.f32.mxu0 0.0
          %991 = vmatmul.mubr.f32.gmra.mxu0 %v919
          %v992 = vpop.f32.mrf.mxu0
          %v993 = vadd.f32 0.0, %v992
          %v994 = vpop.f32.mrf.mxu0
          %995 = vdwg.mxu0
          %1000 = vrot.lane.b32.xlu0 %v887, 103
          %v1001 = vpop.permute.xlu0 %1000
          %1002 = vrot.lane.b32.xlu0 %v888, 103
          %v1003 = vpop.permute.xlu0 %1002
          %1004 = vrot.lane.b32.xlu0 %v889, 103
          %v1005 = vpop.permute.xlu0 %1004
          %1006 = vrot.lane.b32.xlu0 %v890, 103
          %v1007 = vpop.permute.xlu0 %1006
          %vm1008 = vcmask 842752
          %v1009 = vsel %vm1008, %v1001, %v1003
          %v1010 = vsel %vm1008, %v1005, %v1007
          %1013 = vmatprep.subr.mxu0 0.0
          %1014 = vmatpush1.msra.mxu0 %v906
          %1015 = vmatprep.subr.mxu0 0.0
          %1016 = vmatpush1.msra.mxu0 %v905
          %1017 = vmatprep.subr.mxu0 0.0
          %1018 = vmatpush1.msra.mxu0 %v904
          %1019 = vmatprep.subr.mxu0 0.0
          %1020 = vmatpush1.msra.mxu0 %v903
          %1021 = vmatprep.subr.mxu0 0.0
          %1022 = vmatpush1.msra.mxu0 %v902
          %1023 = vmatprep.subr.mxu0 0.0
          %1024 = vmatpush1.msra.mxu0 %v901
          %1025 = vmatprep.subr.mxu0 0.0
          %1026 = vmatpush1.msra.mxu0 %v900
          %1027 = vmatprep.subr.mxu0 0.0
          %1028 = vmatpush1.msra.mxu0 %v899
          %1029 = vmatprep.subr.mxu0 0.0
          %1030 = vmatpush1.msra.mxu0 %v898
          %1031 = vmatprep.subr.mxu0 0.0
          %1032 = vmatpush1.msra.mxu0 %v897
          %1033 = vmatprep.subr.mxu0 0.0
          %1034 = vmatpush1.msra.mxu0 %v896
          %1035 = vmatprep.subr.mxu0 0.0
          %1036 = vmatpush1.msra.mxu0 %v895
          %1037 = vmatprep.subr.mxu0 0.0
          %1038 = vmatpush1.msra.mxu0 %v894
          %1039 = vmatprep.subr.mxu0 0.0
          %1040 = vmatpush1.msra.mxu0 %v893
          %1041 = vmatprep.subr.mxu0 0.0
          %1042 = vmatpush1.msra.mxu0 %v892
          %1043 = vmatprep.subr.mxu0 0.0
          %1044 = vmatpush1.msra.mxu0 %v891
          %1045 = vmatprep.subr.mxu0 0.0
          %1046 = vmatpush2.msra.mxu0 0.0
          %1047 = vmatprep.subr.mxu0 0.0
          %1048 = vmatpush2.msra.mxu0 0.0
          %1049 = vmatprep.subr.mxu0 0.0
          %1050 = vmatpush2.msra.mxu0 0.0
          %1051 = vmatprep.subr.mxu0 0.0
          %1052 = vmatpush2.msra.mxu0 0.0
          %1053 = vmatprep.subr.mxu0 0.0
          %1054 = vmatpush2.msra.mxu0 0.0
          %1055 = vmatprep.subr.mxu0 0.0
          %1056 = vmatpush2.msra.mxu0 0.0
          %1057 = vmatprep.subr.mxu0 0.0
          %1058 = vmatpush2.msra.mxu0 0.0
          %1059 = vmatprep.subr.mxu0 0.0
          %1060 = vmatpush2.msra.mxu0 0.0
          %1061 = vmatprep.subr.mxu0 0.0
          %1062 = vmatpush2.msra.mxu0 0.0
          %1063 = vmatprep.subr.mxu0 0.0
          %1064 = vmatpush2.msra.mxu0 0.0
          %1065 = vmatprep.subr.mxu0 0.0
          %1066 = vmatpush2.msra.mxu0 0.0
          %1067 = vmatprep.subr.mxu0 0.0
          %1068 = vmatpush2.msra.mxu0 0.0
          %1069 = vmatprep.subr.mxu0 0.0
          %1070 = vmatpush2.msra.mxu0 0.0
          %1071 = vmatprep.subr.mxu0 0.0
          %1072 = vmatpush2.msra.mxu0 0.0
          %1073 = vmatprep.subr.mxu0 0.0
          %1074 = vmatpush2.msra.mxu0 0.0
          %1075 = vmatprep.subr.mxu0 0.0
          %1076 = vmatpush2.msra.mxu0 0.0
          %1077 = vmatprep.mubr.f32.mxu0 0.0
          %1078 = vmatmul.mubr.f32.gmra.mxu0 %v1009
          %v1079 = vpop.f32.mrf.mxu0
          %v1080 = vadd.f32 %v988, %v1079
          %v1081 = vpop.f32.mrf.mxu0
          %1082 = vmatprep.mubr.f32.mxu0 0.0
          %1083 = vmatmul.mubr.f32.gmra.mxu0 %v1010
          %v1084 = vpop.f32.mrf.mxu0
          %v1085 = vadd.f32 %v993, %v1084
          %v1086 = vpop.f32.mrf.mxu0
          %1087 = vdwg.mxu0
          %v1088 = vld [vmem:[%s7] sm:$0x1]
          %v1090 = vlaneseq
          %v1091 = vshrl.u32 %v1090, 7
          %v1092 = vsub.s32 0, %v1091
          %v1093 = vrot.slane %v1088, %v1092
          %v1095 = vadd.f32 %v1080, %v1093
          %v1096 = vadd.f32 %v1085, %v1093
          %1097 = vst [vmem:[#allocation3] sm:$0xff] %v1095
          %1098 = vst [vmem:[#allocation3 + $0x8] sm:$0xff] %v1096
        $region60: #{tpu_custom_call.1} parent=51 // pred_fallthru
          _
        // Predicated region
        $region61: #{tpu_custom_call.1} parent=51 // pred_check
          %p1099 = pneg %p233
        $region62: #{tpu_custom_call.1} parent=51 // pred_check_branch
          %1101 = sbr.rel (%p1099) target = $region64
        $region63: #{tpu_custom_call.1} parent=51 // pred_region
          %s1102 = smul.u32 2, %s24
          %s1104 = ssub.s32 256, 256
          %1105 = vsyncadd [#allocation4], %s1104
          %s1106 = smul.addr %s1102, 128
          %s1107 = scalar_lea.hbm %s8, %s1106
          %s1108 = sshll.u32 [#allocation3], 4
          %s1109 = int_to_ptr.vmem [resolvable:$true] %s1108
          %1114 = dma.vmem_to_hbm [thread:$0]  %s1109, 256, %s1107, [#allocation4], 128, 128, 8
        $region64: #{tpu_custom_call.1} parent=51 // pred_fallthru
          _
        // Predicated region
        $region65: #{tpu_custom_call.1} parent=51 // pred_check
          %p1115 = pneg %p233
        $region66: #{tpu_custom_call.1} parent=51 // pred_check_branch
          %1117 = sbr.rel (%p1115) target = $region68
        $region67: #{tpu_custom_call.1} parent=51 // pred_region
          %1118 = dma.done [#allocation4], 256
        $region68: #{tpu_custom_call.1} parent=51 // pred_fallthru
          _
      $region52: #{tpu_custom_call.1} parent=5 // pred_fallthru
        _
      %p1119 = scmp.le.s32.totalorder 2, %s15
      // Predicated region
      $region69: #{tpu_custom_call.1} parent=5 // pred_check
        %p1120 = pneg %p1119
      $region70: #{tpu_custom_call.1} parent=5 // pred_check_branch
        %1122 = sbr.rel (%p1120) target = $region72
      $region71: #{tpu_custom_call.1} parent=5 // pred_region
        %s1123 = ssub.s32 %s15, 2
      $region72: #{tpu_custom_call.1} parent=5 // pred_fallthru
        _
    $region6: #{tpu_custom_call.1} parent=1 // loop_footer
      %s19 = sadd.s32 1, %s15
    $region7: #{tpu_custom_call.1} parent=1 // loop_footer_branch
      %14 = sbr.rel target = $region3
    $region8: #{tpu_custom_call.1} parent=1 // loop_exit
      _
    %1124 = vsyncpa [#allocation4], 1
    %s1125 = scalar_lea.sflag [#allocation4], 1
    %1126 = vsyncpa %s1125, 1

</llo_original>
